<compile_context>
chip_gen: v5e
topology: v5e:2x2
jax: 0.10.0
libtpu: 0.0.40
codegen_flags: <defaults>
</compile_context>

<pallas_src>
import jax
import jax.numpy as jnp
from jax.experimental import pallas as pl
from jax.experimental.pallas import tpu as pltpu


HIDDEN1 = 256
HIDDEN2 = 128
LANE = 128          # TPU lane width; output last dim padded to a multiple of this.


def dqn_kernel(x_ref, w1_ref, b1_ref, w2_ref, b2_ref, w3_ref, b3_ref, o_ref):
    # Fused matmul -> relu -> matmul -> relu -> matmul on one (bm, *) batch tile.
    # MXU operands are bf16 (weights pre-cast, activations cast here); all
    # accumulation / bias / ReLU in f32. Weights are VMEM-resident (constant
    # index_maps), x/out tiles are pipelined across grid steps.
    x = x_ref[...].astype(jnp.bfloat16)
    h1 = jnp.dot(x, w1_ref[...], preferred_element_type=jnp.float32) + b1_ref[...]
    h1 = jnp.maximum(h1, 0.0).astype(jnp.bfloat16)
    h2 = jnp.dot(h1, w2_ref[...], preferred_element_type=jnp.float32) + b2_ref[...]
    h2 = jnp.maximum(h2, 0.0).astype(jnp.bfloat16)
    o_ref[...] = jnp.dot(h2, w3_ref[...], preferred_element_type=jnp.float32) + b3_ref[...]


def _round_up(n, m):
    return ((n + m - 1) // m) * m


def _pad_cols(a, cols):
    r, c = a.shape
    if cols == c:
        return a
    return jnp.pad(a, ((0, 0), (0, cols - c)))


def _pick_bm(batch):
    """Adaptive batch tile.

    Small B (DQN acting path): single tile rounded to the 8-sublane granule.
    Large B: 128..1024-row tiles, keeping >=2 (usually >=4) grid steps so the
    batch axis can shard across v7x's 2 TensorCores and x/out DMAs pipeline.
    VMEM stays far under the 32 MiB scoped default even at bm=1024.
    """
    if batch <= 128:
        return max(8, _round_up(batch, 8))
    bm = _round_up(pl.cdiv(batch, 4), 8)
    return int(min(1024, max(128, bm)))


def dqn_forward(x, params):
    """x: [B, input_dim] float32. params: dict of (W, b) for fc1/fc2/fc3."""
    w1, b1 = params["fc1"]
    w2, b2 = params["fc2"]
    w3, b3 = params["fc3"]

    B, in_dim = x.shape
    out_dim = w3.shape[1]
    out_pad = _round_up(max(out_dim, LANE), LANE)   # lane-dense output stores

    bm = _pick_bm(B)
    grid = (pl.cdiv(B, bm),)

    # One-time tiny weight prep: bf16 MXU operands; pad only fc3's output cols.
    w1_b = w1.astype(jnp.bfloat16)
    w2_b = w2.astype(jnp.bfloat16)
    w3_b = _pad_cols(w3, out_pad).astype(jnp.bfloat16)
    b3_p = _pad_cols(b3, out_pad)

    # Weights/biases: constant block index -> DMA'd once, resident across steps.
    resident = lambda shape: pl.BlockSpec(shape, lambda i: (0, 0))

    flops = 2 * B * (in_dim * HIDDEN1 + HIDDEN1 * HIDDEN2 + HIDDEN2 * out_pad)
    bytes_accessed = (
        B * in_dim * 4 + B * out_pad * 4
        + (in_dim * HIDDEN1 + HIDDEN1 * HIDDEN2 + HIDDEN2 * out_pad) * 2
        + (HIDDEN1 + HIDDEN2 + out_pad) * 4
    )

    out = pl.pallas_call(
        dqn_kernel,
        out_shape=jax.ShapeDtypeStruct((B, out_pad), jnp.float32),
        grid=grid,
        in_specs=[
            # x tile: ragged batch grid, full-extent feature dim (no HBM pad copy)
            pl.BlockSpec((bm, in_dim), lambda i: (i, 0)),
            resident((in_dim, HIDDEN1)), resident((1, HIDDEN1)),
            resident((HIDDEN1, HIDDEN2)), resident((1, HIDDEN2)),
            resident((HIDDEN2, out_pad)), resident((1, out_pad)),
        ],
        out_specs=pl.BlockSpec((bm, out_pad), lambda i: (i, 0)),
        compiler_params=pltpu.CompilerParams(
            dimension_semantics=("parallel",)),               # 2-TC split on v7x
        cost_estimate=pl.CostEstimate(
            flops=flops, transcendentals=0, bytes_accessed=bytes_accessed),
    )(x, w1_b, b1, w2_b, b2, w3_b, b3_p)

    return out[:, :out_dim]


def init_dqn_params(key, input_dim, output_dim):
    """Deterministic init matching PyTorch nn.Linear default scheme:
    U(-1/sqrt(fan_in), 1/sqrt(fan_in)) for both weight and bias."""
    def linear(k, fan_in, fan_out):
        kw, kb = jax.random.split(k)
        bound = 1.0 / jnp.sqrt(fan_in)
        # stored as [in, out] so kernel computes x @ W
        w = jax.random.uniform(kw, (fan_in, fan_out), jnp.float32, -bound, bound)
        b = jax.random.uniform(kb, (1, fan_out), jnp.float32, -bound, bound)
        return w, b

    k1, k2, k3 = jax.random.split(key, 3)
    return {
        "fc1": linear(k1, input_dim, HIDDEN1),
        "fc2": linear(k2, HIDDEN1, HIDDEN2),
        "fc3": linear(k3, HIDDEN2, output_dim),
    }


if __name__ == "__main__":
    key = jax.random.PRNGKey(0)
    k_params, k_x = jax.random.split(key)

    batch, input_dim, output_dim = 2, 32, 8
    params = init_dqn_params(k_params, input_dim, output_dim)
    x = jax.random.normal(k_x, (batch, input_dim), jnp.float32)

    out = dqn_forward(x, params)
    out = jax.block_until_ready(out)

    # Pure-JAX f32 reference for sanity (kernel uses bf16 MXU operands with f32
    # accumulation, so compare with a modest tolerance).
    def ref(x, p):
        h = jnp.maximum(x @ p["fc1"][0] + p["fc1"][1], 0.0)
        h = jnp.maximum(h @ p["fc2"][0] + p["fc2"][1], 0.0)
        return h @ p["fc3"][0] + p["fc3"][1]

    expected = ref(x, params)
    assert out.shape == (batch, output_dim)
    assert jnp.allclose(out, expected, atol=3e-2, rtol=3e-2)
    print("KERNEL_OK")
</pallas_src>

<mosaic_0001>
module attributes {stable_mosaic.version = 11 : i64} {
  func.func @dqn_kernel(%arg0: i32, %arg1: memref<8x32xf32, #tpu.memory_space<vmem>>, %arg2: memref<32x256xbf16, #tpu.memory_space<vmem>>, %arg3: memref<1x256xf32, #tpu.memory_space<vmem>>, %arg4: memref<256x128xbf16, #tpu.memory_space<vmem>>, %arg5: memref<1x128xf32, #tpu.memory_space<vmem>>, %arg6: memref<128x128xbf16, #tpu.memory_space<vmem>>, %arg7: memref<1x128xf32, #tpu.memory_space<vmem>>, %arg8: memref<8x128xf32, #tpu.memory_space<vmem>>) attributes {dimension_semantics = [#tpu.dimension_semantics<parallel>], iteration_bounds = array<i64: 1>, scalar_prefetch = 0 : i64, scratch_operands = 0 : i64, tpu.core_type = #tpu.core_type<tc>, window_params = [{transform_indices = @transform_0, window_bounds = array<i64: 8, 32>}, {pipeline_mode = #tpu.pipeline_mode<synchronous>, transform_indices = @transform_1, window_bounds = array<i64: 32, 256>}, {pipeline_mode = #tpu.pipeline_mode<synchronous>, transform_indices = @transform_2, window_bounds = array<i64: 1, 256>}, {pipeline_mode = #tpu.pipeline_mode<synchronous>, transform_indices = @transform_3, window_bounds = array<i64: 256, 128>}, {pipeline_mode = #tpu.pipeline_mode<synchronous>, transform_indices = @transform_4, window_bounds = array<i64: 1, 128>}, {pipeline_mode = #tpu.pipeline_mode<synchronous>, transform_indices = @transform_5, window_bounds = array<i64: 128, 128>}, {pipeline_mode = #tpu.pipeline_mode<synchronous>, transform_indices = @transform_6, window_bounds = array<i64: 1, 128>}, {transform_indices = @transform_7, window_bounds = array<i64: 8, 128>}]} {
    %c0 = arith.constant 0 : index
    %c0_0 = arith.constant 0 : index
    %0 = vector.load %arg1[%c0, %c0_0] : memref<8x32xf32, #tpu.memory_space<vmem>>, vector<8x32xf32>
    %1 = arith.truncf %0 : vector<8x32xf32> to vector<8x32xbf16>
    %c0_1 = arith.constant 0 : index
    %c0_2 = arith.constant 0 : index
    %2 = vector.load %arg2[%c0_1, %c0_2] : memref<32x256xbf16, #tpu.memory_space<vmem>>, vector<32x256xbf16>
    %cst = arith.constant dense<0.000000e+00> : vector<8x256xf32>
    %3 = tpu.matmul %1, %2, %cst {dimension_numbers = #tpu.dot_dimension_numbers<[1], [0], [0], [1], [0, 0, 1, 1], [], []>} : vector<8x32xbf16>, vector<32x256xbf16>, vector<8x256xf32> -> vector<8x256xf32>
    %c0_3 = arith.constant 0 : index
    %c0_4 = arith.constant 0 : index
    %4 = vector.load %arg3[%c0_3, %c0_4] : memref<1x256xf32, #tpu.memory_space<vmem>>, vector<1x256xf32>
    %5 = vector.broadcast %4 : vector<1x256xf32> to vector<8x256xf32>
    %6 = arith.addf %3, %5 : vector<8x256xf32>
    %cst_5 = arith.constant 0.000000e+00 : f32
    %7 = vector.broadcast %cst_5 : f32 to vector<8x256xf32>
    %8 = arith.maximumf %6, %7 : vector<8x256xf32>
    %9 = arith.truncf %8 : vector<8x256xf32> to vector<8x256xbf16>
    %c0_6 = arith.constant 0 : index
    %c0_7 = arith.constant 0 : index
    %10 = vector.load %arg4[%c0_6, %c0_7] : memref<256x128xbf16, #tpu.memory_space<vmem>>, vector<256x128xbf16>
    %cst_8 = arith.constant dense<0.000000e+00> : vector<8x128xf32>
    %11 = tpu.matmul %9, %10, %cst_8 {dimension_numbers = #tpu.dot_dimension_numbers<[1], [0], [0], [1], [0, 0, 1, 1], [], []>} : vector<8x256xbf16>, vector<256x128xbf16>, vector<8x128xf32> -> vector<8x128xf32>
    %c0_9 = arith.constant 0 : index
    %c0_10 = arith.constant 0 : index
    %12 = vector.load %arg5[%c0_9, %c0_10] : memref<1x128xf32, #tpu.memory_space<vmem>>, vector<1x128xf32>
    %13 = vector.broadcast %12 : vector<1x128xf32> to vector<8x128xf32>
    %14 = arith.addf %11, %13 : vector<8x128xf32>
    %cst_11 = arith.constant 0.000000e+00 : f32
    %15 = vector.broadcast %cst_11 : f32 to vector<8x128xf32>
    %16 = arith.maximumf %14, %15 : vector<8x128xf32>
    %17 = arith.truncf %16 : vector<8x128xf32> to vector<8x128xbf16>
    %c0_12 = arith.constant 0 : index
    %c0_13 = arith.constant 0 : index
    %18 = vector.load %arg6[%c0_12, %c0_13] : memref<128x128xbf16, #tpu.memory_space<vmem>>, vector<128x128xbf16>
    %cst_14 = arith.constant dense<0.000000e+00> : vector<8x128xf32>
    %19 = tpu.matmul %17, %18, %cst_14 {dimension_numbers = #tpu.dot_dimension_numbers<[1], [0], [0], [1], [0, 0, 1, 1], [], []>} : vector<8x128xbf16>, vector<128x128xbf16>, vector<8x128xf32> -> vector<8x128xf32>
    %c0_15 = arith.constant 0 : index
    %c0_16 = arith.constant 0 : index
    %20 = vector.load %arg7[%c0_15, %c0_16] : memref<1x128xf32, #tpu.memory_space<vmem>>, vector<1x128xf32>
    %21 = vector.broadcast %20 : vector<1x128xf32> to vector<8x128xf32>
    %22 = arith.addf %19, %21 : vector<8x128xf32>
    %c0_17 = arith.constant 0 : index
    %c0_18 = arith.constant 0 : index
    %23 = vector.load %arg8[%c0_17, %c0_18] : memref<8x128xf32, #tpu.memory_space<vmem>>, vector<8x128xf32>
    tpu.vector_store %arg8[%c0_17, %c0_18], %22 {strides = array<i32>} : memref<8x128xf32, #tpu.memory_space<vmem>>, vector<8x128xf32>,
    return
  }
  func.func @transform_0(%arg0: i32) -> (i32, i32) {
    %c0_i32 = arith.constant 0 : i32
    %c0_i32_0 = arith.constant 0 : i32
    return %arg0, %c0_i32 : i32, i32
  }
  func.func @transform_1(%arg0: i32) -> (i32, i32) {
    %c0_i32 = arith.constant 0 : i32
    %c0_i32_0 = arith.constant 0 : i32
    %c0_i32_1 = arith.constant 0 : i32
    return %c0_i32, %c0_i32_0 : i32, i32
  }
  func.func @transform_2(%arg0: i32) -> (i32, i32) {
    %c0_i32 = arith.constant 0 : i32
    %c0_i32_0 = arith.constant 0 : i32
    %c0_i32_1 = arith.constant 0 : i32
    return %c0_i32, %c0_i32_0 : i32, i32
  }
  func.func @transform_3(%arg0: i32) -> (i32, i32) {
    %c0_i32 = arith.constant 0 : i32
    %c0_i32_0 = arith.constant 0 : i32
    %c0_i32_1 = arith.constant 0 : i32
    return %c0_i32, %c0_i32_0 : i32, i32
  }
  func.func @transform_4(%arg0: i32) -> (i32, i32) {
    %c0_i32 = arith.constant 0 : i32
    %c0_i32_0 = arith.constant 0 : i32
    %c0_i32_1 = arith.constant 0 : i32
    return %c0_i32, %c0_i32_0 : i32, i32
  }
  func.func @transform_5(%arg0: i32) -> (i32, i32) {
    %c0_i32 = arith.constant 0 : i32
    %c0_i32_0 = arith.constant 0 : i32
    %c0_i32_1 = arith.constant 0 : i32
    return %c0_i32, %c0_i32_0 : i32, i32
  }
  func.func @transform_6(%arg0: i32) -> (i32, i32) {
    %c0_i32 = arith.constant 0 : i32
    %c0_i32_0 = arith.constant 0 : i32
    %c0_i32_1 = arith.constant 0 : i32
    return %c0_i32, %c0_i32_0 : i32, i32
  }
  func.func @transform_7(%arg0: i32) -> (i32, i32) {
    %c0_i32 = arith.constant 0 : i32
    %c0_i32_0 = arith.constant 0 : i32
    return %arg0, %c0_i32 : i32, i32
  }
}

</mosaic_0001>

<llo_original>
// kernel: tpu_custom_call.1
$region0: #{tpu_custom_call.1}
  #allocation0 [shape = 'u32[]', space=smem, size = 0x4, offset = 0x4, fixed_abs, tag = 'smem constant byte address 0x4 - core index']
  #allocation1 [shape = 'u32[72,128]{1,0:T(1,128)}', space=vmem, size = 0x9000, scoped, tag = 'internal scratch']
  %s0 = inlined_call_operand.hbm [shape: f32[2,32], index: 0, kind: input, shape index: {}]
  %s1 = inlined_call_operand.hbm [shape: bf16[32,256], index: 1, kind: input, shape index: {}]
  %s2 = inlined_call_operand.hbm [shape: f32[1,256], index: 2, kind: input, shape index: {}]
  %s3 = inlined_call_operand.hbm [shape: bf16[256,128], index: 3, kind: input, shape index: {}]
  %s4 = inlined_call_operand.vmem [shape: f32[1,128], index: 4, kind: input, shape index: {}]
  %s5 = inlined_call_operand.hbm [shape: bf16[128,128], index: 5, kind: input, shape index: {}]
  %s6 = inlined_call_operand.vmem [shape: f32[1,128], index: 6, kind: input, shape index: {}]
  %s7 = inlined_call_operand.hbm [shape: f32[2,128], index: 7, kind: output, shape index: {}]
  %s8 = sld [smem:[#allocation0]]
  $region58: #{tpu_custom_call.1} parent=0
    _
  %s10 = ssub.s32 1, %s8
  %s11 = scalar_select 0, %s10, %s8
  $region1: #{tpu_custom_call.1} parent=0
    #allocation2 [shape = 'u8[4096]{0}', space=vmem, size = 0x1000, scoped, tag = 'input window, operand 0, single buffered']
    #allocation3 [shape = 's32[1]{0}', space=sflag, size = 0x4, scoped, tag = 'scoped memory for tpu_custom_call.1']
    #allocation4 [shape = 's32[1]{0}', space=sflag, size = 0x4, scoped, tag = 'scoped memory for tpu_custom_call.1']
    #allocation5 [shape = 'u8[16384]{0}', space=vmem, size = 0x4000, scoped, tag = 'input window, operand 1, single buffered']
    #allocation6 [shape = 's32[1]{0}', space=sflag, size = 0x4, scoped, tag = 'scoped memory for tpu_custom_call.1']
    #allocation7 [shape = 'u8[1024]{0}', space=vmem, size = 0x400, scoped, tag = 'input window, operand 2, single buffered']
    #allocation8 [shape = 'u8[65536]{0}', space=vmem, size = 0x10000, scoped, tag = 'input window, operand 3, single buffered']
    #allocation9 [shape = 's32[1]{0}', space=sflag, size = 0x4, scoped, tag = 'scoped memory for tpu_custom_call.1']
    #allocation10 [shape = 'u8[32768]{0}', space=vmem, size = 0x8000, scoped, tag = 'input window, operand 5, single buffered']
    #allocation11 [shape = 'u8[4096]{0}', space=vmem, size = 0x1000, scoped, tag = 'output window, operand 0, single buffered']
    %12 = vsyncpa [#allocation3], 0
    %13 = vsyncpa [#allocation6], 0
    %14 = vsyncpa [#allocation9], 0
    %15 = vsyncpa [#allocation4], 0
    // Predicated region
    $region2: #{tpu_custom_call.1} parent=1 // pred_check
      _
    $region3: #{tpu_custom_call.1} parent=1 // pred_check_branch
      %17 = sbr.rel (0) target = $region5
    $region4: #{tpu_custom_call.1} parent=1 // pred_region
      %19 = vsyncadd [#allocation3], 96
      %s20 = sshll.u32 %s0, 4
      %s21 = int_to_ptr.hbm [resolvable:$true] %s20
      %s22 = sshll.u32 [#allocation2], 4
      %s23 = int_to_ptr.vmem [resolvable:$true] %s22
      %28 = dma.hbm_to_vmem [thread:$0]  %s21, 32, %s23, [#allocation3], 32, 32, 2
    $region5: #{tpu_custom_call.1} parent=1 // pred_fallthru
      _
    // Predicated region
    $region6: #{tpu_custom_call.1} parent=1 // pred_check
      _
    $region7: #{tpu_custom_call.1} parent=1 // pred_check_branch
      %30 = sbr.rel (0) target = $region9
    $region8: #{tpu_custom_call.1} parent=1 // pred_region
      %32 = vsyncadd [#allocation6], 0
      %s33 = sshll.u32 %s1, 4
      %s34 = int_to_ptr.hbm [resolvable:$true] %s33
      %s35 = sshll.u32 [#allocation5], 4
      %s36 = int_to_ptr.vmem [resolvable:$true] %s35
      %41 = dma.hbm_to_vmem [thread:$0]  %s34, 512, %s36, [#allocation6], 128, 128, 8
    $region9: #{tpu_custom_call.1} parent=1 // pred_fallthru
      _
    // Predicated region
    $region10: #{tpu_custom_call.1} parent=1 // pred_check
      _
    $region11: #{tpu_custom_call.1} parent=1 // pred_check_branch
      %43 = sbr.rel (0) target = $region13
    $region12: #{tpu_custom_call.1} parent=1 // pred_region
      %45 = vsyncadd [#allocation6], 0
      %s47 = sshll.u32 %s2, 4
      %s48 = int_to_ptr.hbm [resolvable:$true] %s47
      %s49 = sshll.u32 [#allocation7], 4
      %s50 = int_to_ptr.vmem [resolvable:$true] %s49
      %52 = dma.hbm_to_vmem [thread:$0]  %s48, 32, %s50, [#allocation6]
    $region13: #{tpu_custom_call.1} parent=1 // pred_fallthru
      _
    // Predicated region
    $region14: #{tpu_custom_call.1} parent=1 // pred_check
      _
    $region15: #{tpu_custom_call.1} parent=1 // pred_check_branch
      %54 = sbr.rel (0) target = $region17
    $region16: #{tpu_custom_call.1} parent=1 // pred_region
      %56 = vsyncadd [#allocation9], 0
      %s57 = sshll.u32 %s3, 4
      %s58 = int_to_ptr.hbm [resolvable:$true] %s57
      %s59 = sshll.u32 [#allocation8], 4
      %s60 = int_to_ptr.vmem [resolvable:$true] %s59
      %65 = dma.hbm_to_vmem [thread:$0]  %s58, 2048, %s60, [#allocation9], 64, 64, 4
    $region17: #{tpu_custom_call.1} parent=1 // pred_fallthru
      _
    // Predicated region
    $region18: #{tpu_custom_call.1} parent=1 // pred_check
      _
    $region19: #{tpu_custom_call.1} parent=1 // pred_check_branch
      %67 = sbr.rel (0) target = $region21
    $region20: #{tpu_custom_call.1} parent=1 // pred_region
      _
    $region21: #{tpu_custom_call.1} parent=1 // pred_fallthru
      _
    // Predicated region
    $region22: #{tpu_custom_call.1} parent=1 // pred_check
      _
    $region23: #{tpu_custom_call.1} parent=1 // pred_check_branch
      %69 = sbr.rel (0) target = $region25
    $region24: #{tpu_custom_call.1} parent=1 // pred_region
      %71 = vsyncadd [#allocation9], 0
      %s72 = sshll.u32 %s5, 4
      %s73 = int_to_ptr.hbm [resolvable:$true] %s72
      %s74 = sshll.u32 [#allocation10], 4
      %s75 = int_to_ptr.vmem [resolvable:$true] %s74
      %80 = dma.hbm_to_vmem [thread:$0]  %s73, 1024, %s75, [#allocation9], 64, 64, 4
    $region25: #{tpu_custom_call.1} parent=1 // pred_fallthru
      _
    // Predicated region
    $region26: #{tpu_custom_call.1} parent=1 // pred_check
      _
    $region27: #{tpu_custom_call.1} parent=1 // pred_check_branch
      %82 = sbr.rel (0) target = $region29
    $region28: #{tpu_custom_call.1} parent=1 // pred_region
      _
    $region29: #{tpu_custom_call.1} parent=1 // pred_fallthru
      _
    // Predicated region
    $region30: #{tpu_custom_call.1} parent=1 // pred_check
      _
    $region31: #{tpu_custom_call.1} parent=1 // pred_check_branch
      %84 = sbr.rel (0) target = $region33
    $region32: #{tpu_custom_call.1} parent=1 // pred_region
      %86 = dma.done [#allocation3], 128
    $region33: #{tpu_custom_call.1} parent=1 // pred_fallthru
      _
    // Predicated region
    $region34: #{tpu_custom_call.1} parent=1 // pred_check
      _
    $region35: #{tpu_custom_call.1} parent=1 // pred_check_branch
      %88 = sbr.rel (0) target = $region37
    $region36: #{tpu_custom_call.1} parent=1 // pred_region
      %90 = dma.done [#allocation6], 512
    $region37: #{tpu_custom_call.1} parent=1 // pred_fallthru
      _
    // Predicated region
    $region38: #{tpu_custom_call.1} parent=1 // pred_check
      _
    $region39: #{tpu_custom_call.1} parent=1 // pred_check_branch
      %92 = sbr.rel (0) target = $region41
    $region40: #{tpu_custom_call.1} parent=1 // pred_region
      %94 = dma.done [#allocation6], 32
    $region41: #{tpu_custom_call.1} parent=1 // pred_fallthru
      _
    // Predicated region
    $region42: #{tpu_custom_call.1} parent=1 // pred_check
      _
    $region43: #{tpu_custom_call.1} parent=1 // pred_check_branch
      %96 = sbr.rel (0) target = $region45
    $region44: #{tpu_custom_call.1} parent=1 // pred_region
      %98 = dma.done [#allocation9], 2048
    $region45: #{tpu_custom_call.1} parent=1 // pred_fallthru
      _
    // Predicated region
    $region46: #{tpu_custom_call.1} parent=1 // pred_check
      _
    $region47: #{tpu_custom_call.1} parent=1 // pred_check_branch
      %100 = sbr.rel (0) target = $region49
    $region48: #{tpu_custom_call.1} parent=1 // pred_region
      %102 = dma.done [#allocation9], 1024
    $region49: #{tpu_custom_call.1} parent=1 // pred_fallthru
      _
    %v104 = vld [vmem:[#allocation2] sm:$0xff]
    %v105 = vpack.c.bf16 %v104, %v104
    %v106 = vld [vmem:[#allocation5] sm:$0xff]
    %v107 = vld [vmem:[#allocation5 + $0x8] sm:$0xff]
    %v108 = vld [vmem:[#allocation5 + $0x10] sm:$0xff]
    %v109 = vld [vmem:[#allocation5 + $0x18] sm:$0xff]
    %v110 = vld [vmem:[#allocation7] sm:$0x3]
    %v112 = vperm.slane %v110, 0
    %v113 = vperm.slane %v110, 1
    %v120 = vunpack.c.l.b16 %v106
    %v121 = vunpack.c.h.b16 %v106
    %v122 = vunpack.c.l.b16 %v107
    %v123 = vunpack.c.h.b16 %v107
    %v124 = vunpack.c.l.b16 %v108
    %v125 = vunpack.c.h.b16 %v108
    %v126 = vunpack.c.l.b16 %v109
    %v127 = vunpack.c.h.b16 %v109
    %v128 = vpack.c.b16 %v122, %v120
    %v129 = vpack.c.b16 %v123, %v121
    %v130 = vpack.c.b16 %v126, %v124
    %v131 = vpack.c.b16 %v127, %v125
    %vm136 = vcmask 261120
    %v138 = vsel %vm136, %v105, 0
    %140 = vmatpush.bf16.msra.mxu0 0
    %141 = vmatpush.bf16.msra.mxu0 0
    %142 = vmatpush.bf16.msra.mxu0 0
    %143 = vmatpush.bf16.msra.mxu0 0
    %144 = vmatpush.bf16.msra.mxu0 0
    %145 = vmatpush.bf16.msra.mxu0 0
    %146 = vmatpush.bf16.msra.mxu0 %v130
    %147 = vmatpush.bf16.msra.mxu0 %v128
    %148 = vmatmul.bf16.gmra.mxu0 %v138
    %v149 = vpop.f32.mrf.mxu0
    %v150 = vadd.f32 %v112, %v149
    %v151 = vpop.f32.mrf.mxu0
    %152 = vdwg.mxu0
    %153 = vmatpush.bf16.msra.mxu0 0
    %154 = vmatpush.bf16.msra.mxu0 0
    %155 = vmatpush.bf16.msra.mxu0 0
    %156 = vmatpush.bf16.msra.mxu0 0
    %157 = vmatpush.bf16.msra.mxu0 0
    %158 = vmatpush.bf16.msra.mxu0 0
    %159 = vmatpush.bf16.msra.mxu0 %v131
    %160 = vmatpush.bf16.msra.mxu0 %v129
    %161 = vmatmul.bf16.gmra.mxu0 %v138
    %v162 = vpop.f32.mrf.mxu0
    %v163 = vadd.f32 %v113, %v162
    %v164 = vpop.f32.mrf.mxu0
    %165 = vdwg.mxu0
    %v166 = vmax.f32 %v150, 0.0
    %v167 = vmax.f32 %v163, 0.0
    %v168 = vpack.c.bf16 %v166, %v166
    %v169 = vpack.c.bf16 %v167, %v167
    %v170 = vld [vmem:[#allocation8] sm:$0xf]
    %v171 = vld [vmem:[#allocation8 + $0x4] sm:$0xf]
    %v172 = vld [vmem:[#allocation8 + $0x8] sm:$0xf]
    %v173 = vld [vmem:[#allocation8 + $0xc] sm:$0xf]
    %v174 = vld [vmem:[#allocation8 + $0x10] sm:$0xf]
    %v175 = vld [vmem:[#allocation8 + $0x14] sm:$0xf]
    %v176 = vld [vmem:[#allocation8 + $0x18] sm:$0xf]
    %v177 = vld [vmem:[#allocation8 + $0x1c] sm:$0xf]
    %v178 = vld [vmem:[#allocation8 + $0x20] sm:$0xf]
    %v179 = vld [vmem:[#allocation8 + $0x24] sm:$0xf]
    %v180 = vld [vmem:[#allocation8 + $0x28] sm:$0xf]
    %v181 = vld [vmem:[#allocation8 + $0x2c] sm:$0xf]
    %v182 = vld [vmem:[#allocation8 + $0x30] sm:$0xf]
    %v183 = vld [vmem:[#allocation8 + $0x34] sm:$0xf]
    %v184 = vld [vmem:[#allocation8 + $0x38] sm:$0xf]
    %v185 = vld [vmem:[#allocation8 + $0x3c] sm:$0xf]
    %v186 = vld [vmem:[#allocation8 + $0x40] sm:$0xf]
    %v187 = vld [vmem:[#allocation8 + $0x44] sm:$0xf]
    %v188 = vld [vmem:[#allocation8 + $0x48] sm:$0xf]
    %v189 = vld [vmem:[#allocation8 + $0x4c] sm:$0xf]
    %v190 = vld [vmem:[#allocation8 + $0x50] sm:$0xf]
    %v191 = vld [vmem:[#allocation8 + $0x54] sm:$0xf]
    %v192 = vld [vmem:[#allocation8 + $0x58] sm:$0xf]
    %v193 = vld [vmem:[#allocation8 + $0x5c] sm:$0xf]
    %v194 = vld [vmem:[#allocation8 + $0x60] sm:$0xf]
    %v195 = vld [vmem:[#allocation8 + $0x64] sm:$0xf]
    %v196 = vld [vmem:[#allocation8 + $0x68] sm:$0xf]
    %v197 = vld [vmem:[#allocation8 + $0x6c] sm:$0xf]
    %v198 = vld [vmem:[#allocation8 + $0x70] sm:$0xf]
    %v199 = vld [vmem:[#allocation8 + $0x74] sm:$0xf]
    %v200 = vld [vmem:[#allocation8 + $0x78] sm:$0xf]
    %v201 = vld [vmem:[#allocation8 + $0x7c] sm:$0xf]
    %v202 = vld [vmem:[%s4] sm:$0x1]
    %v204 = vperm.slane %v202, 0
    %v238 = vunpack.c.l.b16 %v170
    %v239 = vunpack.c.l.b16 %v171
    %v240 = vunpack.c.l.b16 %v172
    %v241 = vunpack.c.l.b16 %v173
    %v242 = vunpack.c.l.b16 %v174
    %v243 = vunpack.c.l.b16 %v175
    %v244 = vunpack.c.l.b16 %v176
    %v245 = vunpack.c.l.b16 %v177
    %v246 = vunpack.c.l.b16 %v178
    %v247 = vunpack.c.l.b16 %v179
    %v248 = vunpack.c.l.b16 %v180
    %v249 = vunpack.c.l.b16 %v181
    %v250 = vunpack.c.l.b16 %v182
    %v251 = vunpack.c.l.b16 %v183
    %v252 = vunpack.c.l.b16 %v184
    %v253 = vunpack.c.l.b16 %v185
    %v254 = vunpack.c.l.b16 %v186
    %v255 = vunpack.c.l.b16 %v187
    %v256 = vunpack.c.l.b16 %v188
    %v257 = vunpack.c.l.b16 %v189
    %v258 = vunpack.c.l.b16 %v190
    %v259 = vunpack.c.l.b16 %v191
    %v260 = vunpack.c.l.b16 %v192
    %v261 = vunpack.c.l.b16 %v193
    %v262 = vunpack.c.l.b16 %v194
    %v263 = vunpack.c.l.b16 %v195
    %v264 = vunpack.c.l.b16 %v196
    %v265 = vunpack.c.l.b16 %v197
    %v266 = vunpack.c.l.b16 %v198
    %v267 = vunpack.c.l.b16 %v199
    %v268 = vunpack.c.l.b16 %v200
    %v269 = vunpack.c.l.b16 %v201
    %v270 = vpack.c.b16 %v239, %v238
    %v271 = vpack.c.b16 %v241, %v240
    %v272 = vpack.c.b16 %v243, %v242
    %v273 = vpack.c.b16 %v245, %v244
    %v274 = vpack.c.b16 %v247, %v246
    %v275 = vpack.c.b16 %v249, %v248
    %v276 = vpack.c.b16 %v251, %v250
    %v277 = vpack.c.b16 %v253, %v252
    %v278 = vpack.c.b16 %v255, %v254
    %v279 = vpack.c.b16 %v257, %v256
    %v280 = vpack.c.b16 %v259, %v258
    %v281 = vpack.c.b16 %v261, %v260
    %v282 = vpack.c.b16 %v263, %v262
    %v283 = vpack.c.b16 %v265, %v264
    %v284 = vpack.c.b16 %v267, %v266
    %v285 = vpack.c.b16 %v269, %v268
    %302 = vmatpush.bf16.msra.mxu0 %v277
    %303 = vmatpush.bf16.msra.mxu0 %v276
    %304 = vmatpush.bf16.msra.mxu0 %v275
    %305 = vmatpush.bf16.msra.mxu0 %v274
    %306 = vmatpush.bf16.msra.mxu0 %v273
    %307 = vmatpush.bf16.msra.mxu0 %v272
    %308 = vmatpush.bf16.msra.mxu0 %v271
    %309 = vmatpush.bf16.msra.mxu0 %v270
    %310 = vmatmul.bf16.gmra.mxu0 %v168
    %v311 = vpop.f32.mrf.mxu0
    %v312 = vadd.f32 %v204, %v311
    %v313 = vpop.f32.mrf.mxu0
    %314 = vdwg.mxu0
    %315 = vmatpush.bf16.msra.mxu0 %v285
    %316 = vmatpush.bf16.msra.mxu0 %v284
    %317 = vmatpush.bf16.msra.mxu0 %v283
    %318 = vmatpush.bf16.msra.mxu0 %v282
    %319 = vmatpush.bf16.msra.mxu0 %v281
    %320 = vmatpush.bf16.msra.mxu0 %v280
    %321 = vmatpush.bf16.msra.mxu0 %v279
    %322 = vmatpush.bf16.msra.mxu0 %v278
    %323 = vmatmul.bf16.gmra.mxu0 %v169
    %v324 = vpop.f32.mrf.mxu0
    %v325 = vadd.f32 %v312, %v324
    %v326 = vpop.f32.mrf.mxu0
    %327 = vdwg.mxu0
    %v328 = vmax.f32 %v325, 0.0
    %v329 = vpack.c.bf16 %v328, %v328
    %v330 = vld [vmem:[#allocation10] sm:$0xf]
    %v331 = vld [vmem:[#allocation10 + $0x4] sm:$0xf]
    %v332 = vld [vmem:[#allocation10 + $0x8] sm:$0xf]
    %v333 = vld [vmem:[#allocation10 + $0xc] sm:$0xf]
    %v334 = vld [vmem:[#allocation10 + $0x10] sm:$0xf]
    %v335 = vld [vmem:[#allocation10 + $0x14] sm:$0xf]
    %v336 = vld [vmem:[#allocation10 + $0x18] sm:$0xf]
    %v337 = vld [vmem:[#allocation10 + $0x1c] sm:$0xf]
    %v338 = vld [vmem:[#allocation10 + $0x20] sm:$0xf]
    %v339 = vld [vmem:[#allocation10 + $0x24] sm:$0xf]
    %v340 = vld [vmem:[#allocation10 + $0x28] sm:$0xf]
    %v341 = vld [vmem:[#allocation10 + $0x2c] sm:$0xf]
    %v342 = vld [vmem:[#allocation10 + $0x30] sm:$0xf]
    %v343 = vld [vmem:[#allocation10 + $0x34] sm:$0xf]
    %v344 = vld [vmem:[#allocation10 + $0x38] sm:$0xf]
    %v345 = vld [vmem:[#allocation10 + $0x3c] sm:$0xf]
    %v346 = vld [vmem:[%s6] sm:$0x1]
    %v348 = vperm.slane %v346, 0
    %v366 = vunpack.c.l.b16 %v330
    %v367 = vunpack.c.l.b16 %v331
    %v368 = vunpack.c.l.b16 %v332
    %v369 = vunpack.c.l.b16 %v333
    %v370 = vunpack.c.l.b16 %v334
    %v371 = vunpack.c.l.b16 %v335
    %v372 = vunpack.c.l.b16 %v336
    %v373 = vunpack.c.l.b16 %v337
    %v374 = vunpack.c.l.b16 %v338
    %v375 = vunpack.c.l.b16 %v339
    %v376 = vunpack.c.l.b16 %v340
    %v377 = vunpack.c.l.b16 %v341
    %v378 = vunpack.c.l.b16 %v342
    %v379 = vunpack.c.l.b16 %v343
    %v380 = vunpack.c.l.b16 %v344
    %v381 = vunpack.c.l.b16 %v345
    %v382 = vpack.c.b16 %v367, %v366
    %v383 = vpack.c.b16 %v369, %v368
    %v384 = vpack.c.b16 %v371, %v370
    %v385 = vpack.c.b16 %v373, %v372
    %v386 = vpack.c.b16 %v375, %v374
    %v387 = vpack.c.b16 %v377, %v376
    %v388 = vpack.c.b16 %v379, %v378
    %v389 = vpack.c.b16 %v381, %v380
    %398 = vmatpush.bf16.msra.mxu0 %v389
    %399 = vmatpush.bf16.msra.mxu0 %v388
    %400 = vmatpush.bf16.msra.mxu0 %v387
    %401 = vmatpush.bf16.msra.mxu0 %v386
    %402 = vmatpush.bf16.msra.mxu0 %v385
    %403 = vmatpush.bf16.msra.mxu0 %v384
    %404 = vmatpush.bf16.msra.mxu0 %v383
    %405 = vmatpush.bf16.msra.mxu0 %v382
    %406 = vmatmul.bf16.gmra.mxu0 %v329
    %v407 = vpop.f32.mrf.mxu0
    %v408 = vadd.f32 %v348, %v407
    %v409 = vpop.f32.mrf.mxu0
    %410 = vdwg.mxu0
    %411 = vst [vmem:[#allocation11] sm:$0xff] %v408
    // Predicated region
    $region50: #{tpu_custom_call.1} parent=1 // pred_check
      _
    $region51: #{tpu_custom_call.1} parent=1 // pred_check_branch
      %413 = sbr.rel (0) target = $region53
    $region52: #{tpu_custom_call.1} parent=1 // pred_region
      %415 = vsyncadd [#allocation4], 96
      %s416 = sshll.u32 [#allocation11], 4
      %s417 = int_to_ptr.vmem [resolvable:$true] %s416
      %s418 = sshll.u32 %s7, 4
      %s419 = int_to_ptr.hbm [resolvable:$true] %s418
      %424 = dma.vmem_to_hbm [thread:$0]  %s417, 32, %s419, [#allocation4], 32, 32, 2
    $region53: #{tpu_custom_call.1} parent=1 // pred_fallthru
      _
    // Predicated region
    $region54: #{tpu_custom_call.1} parent=1 // pred_check
      _
    $region55: #{tpu_custom_call.1} parent=1 // pred_check_branch
      %426 = sbr.rel (0) target = $region57
    $region56: #{tpu_custom_call.1} parent=1 // pred_region
      %428 = dma.done [#allocation4], 128
    $region57: #{tpu_custom_call.1} parent=1 // pred_fallthru
      _
    %429 = vsyncpa [#allocation3], 1
    %430 = vsyncpa [#allocation6], 1
    %431 = vsyncpa [#allocation9], 1
    %432 = vsyncpa [#allocation4], 1

</llo_original>
